<compile_context>
chip_gen: v6e
topology: v6e:2x2x1
jax: 0.10.0
libtpu: 0.0.40
codegen_flags: <defaults>
</compile_context>

<pallas_src>
import functools
import math

import jax
import jax.numpy as jnp
from jax.experimental import pallas as pl
from jax.experimental.pallas import tpu as pltpu


def _round_up(x, m):
    return ((x + m - 1) // m) * m


def _round_down(x, m):
    return (x // m) * m


def _chip_info():
    """Return (vmem_budget_bytes, num_tensorcores) with safe fallbacks."""
    vmem_cap = 64 * 1024 * 1024                     # v7x per-core = worst case
    try:
        info = pltpu.get_tpu_info()
        vmem_cap = int(getattr(info, "vmem_capacity_bytes", vmem_cap))
    except Exception:
        pass
    n_tc = 1
    try:
        kind = jax.devices()[0].device_kind.lower()
        if "7" in kind:                             # v7x: 2 TensorCores / chip
            n_tc = 2
    except Exception:
        pass
    # Leave 25% headroom for Mosaic internal scratch and pipeline bookkeeping.
    return (3 * vmem_cap) // 4, n_tc


# --------------------------------------------------------------------------
# Kernels
# --------------------------------------------------------------------------
def _maxdetector_kernel(x_ref, w_ref, b_ref, o_ref):
    """Resident-weight path: whole W in VMEM, batch-only grid."""
    # x_ref: (tb, D)  w_ref: (D, D) bf16  b_ref: (1, D) f32  o_ref: (tb, D)
    x = x_ref[...].astype(w_ref.dtype)                       # bf16 MXU operands
    logits = jnp.dot(x, w_ref[...],
                     preferred_element_type=jnp.float32) + b_ref[...]
    m = jnp.max(logits, axis=-1, keepdims=True)
    e = jnp.exp(logits - m)
    s = jnp.sum(e, axis=-1, keepdims=True)
    o_ref[...] = (e / s).astype(o_ref.dtype)                 # exact normalization


def _maxdetector_kernel_ktiled(x_ref, w_ref, b_ref, o_ref, acc_ref, *, d_in, tk):
    """K-tiled path for large D: stream (tk, D) weight slabs, f32 accumulator."""
    k = pl.program_id(1)

    @pl.when(k == 0)
    def _():
        acc_ref[...] = jnp.zeros_like(acc_ref)

    x = x_ref[...]
    if d_in % tk != 0:          # static: last K slab is ragged -> zero its pad
        col = k * tk + jax.lax.broadcasted_iota(jnp.int32, x.shape, 1)
        x = jnp.where(col < d_in, x, 0.0)
    acc_ref[...] += jnp.dot(x.astype(w_ref.dtype), w_ref[...],
                            preferred_element_type=jnp.float32)

    @pl.when(k == pl.num_programs(1) - 1)
    def _():
        logits = acc_ref[...] + b_ref[...]
        m = jnp.max(logits, axis=-1, keepdims=True)
        e = jnp.exp(logits - m)
        s = jnp.sum(e, axis=-1, keepdims=True)
        o_ref[...] = (e / s).astype(o_ref.dtype)


# --------------------------------------------------------------------------
# One-time parameter packing + plan selection
# --------------------------------------------------------------------------
def prepare_params(weight, bias, *, weight_dtype=jnp.bfloat16,
                   force_mode=None, tile_k=None):
    """Pack W/b once (transpose, bf16 cast, optional K zero-pad) and pick the
    execution plan. Reuse the returned dict across calls so none of this prep
    ever sits on the per-call path.

    weight: (D, D) torch nn.Linear layout (out_features, in_features)
    bias:   (D,)
    """
    d_out, d_in = weight.shape
    budget, n_tc = _chip_info()
    w_isz = jnp.dtype(weight_dtype).itemsize

    w_t = weight.T.astype(weight_dtype)             # (d_in, d_out): y = x @ w_t
    b2d = bias.reshape(1, d_out).astype(jnp.float32)

    # Resident plan feasibility: (possibly double-buffered) weight + bias plus
    # room for at least ~256-row double-buffered x/out tiles.
    resident_bytes = 2 * (d_in * d_out * w_isz + d_out * 4)
    per_row_bytes = 2 * d_in * 4 + 2 * d_out * 4
    resident_ok = resident_bytes + 256 * per_row_bytes <= budget

    mode = force_mode or ("resident" if resident_ok else "ktiled")
    if mode == "ktiled" and d_in < 128:
        mode = "resident"       # K tiling needs >=128-wide slabs; tiny K is resident

    if mode == "resident":
        return dict(mode="resident", w=w_t, b=b2d, d_in=d_in, d_out=d_out,
                    budget=budget, n_tc=n_tc)

    # K-tiled plan: pick tk (multiple of 128) so the double-buffered weight
    # slab uses about a third of the budget, then zero-pad K once.
    if tile_k is None:
        tile_k = _round_down(max(budget // (6 * d_out * w_isz), 128), 128)
        tile_k = min(tile_k, max(128, _round_down(d_in, 128)), 2048)
    assert tile_k % 128 == 0, "tile_k must be a multiple of 128"
    k_pad = _round_up(d_in, tile_k)
    if k_pad != d_in:                               # one-time K zero-pad
        w_t = jnp.zeros((k_pad, d_out), weight_dtype).at[:d_in].set(w_t)
    return dict(mode="ktiled", w=w_t, b=b2d, d_in=d_in, d_out=d_out,
                tk=tile_k, budget=budget, n_tc=n_tc)


def _pick_tile_b(B, k_width, d_out, avail_bytes, n_tc, x_isz, o_isz,
                 target_tile_bytes=4 << 20, extra_row_bytes=0):
    """Batch tile: 8-aligned, ~4 MiB x-tiles, fits the VMEM budget, and on
    dual-TensorCore chips keeps the parallel grid step count balanced."""
    if B <= 8:
        return B
    per_row = 2 * k_width * x_isz + 2 * d_out * o_isz + extra_row_bytes
    tb = max(8, min(
        _round_down(max(target_tile_bytes // max(k_width * x_isz, 1), 8), 8),
        _round_down(max(avail_bytes, per_row * 8) // per_row, 8),
        2048,
        _round_down(B, 8),
    ))
    if n_tc > 1:                                    # v7x only: balance both TCs
        steps = pl.cdiv(B, tb)
        if steps < n_tc or steps % n_tc != 0:
            steps = _round_up(max(steps, n_tc), n_tc)
            tb = max(8, min(tb, _round_up(pl.cdiv(B, steps), 8)))
    return tb


# --------------------------------------------------------------------------
# Forward
# --------------------------------------------------------------------------
def max_detector_forward(x, params, *, out_dtype=None, interpret=False):
    """y = softmax(x @ W.T + b, axis=-1) using pre-packed params."""
    B, D = x.shape
    assert D == params["d_in"], "feature dim mismatch"
    d_out = params["d_out"]
    out_dtype = out_dtype or x.dtype
    budget, n_tc = params["budget"], params["n_tc"]
    w, b = params["w"], params["b"]
    x_isz = jnp.dtype(x.dtype).itemsize
    o_isz = jnp.dtype(out_dtype).itemsize

    if params["mode"] == "resident":
        resident = 2 * (w.size * w.dtype.itemsize + b.size * 4)
        tb = _pick_tile_b(B, D, d_out, budget - resident, n_tc, x_isz, o_isz)
        est = resident + tb * (2 * D * x_isz + 2 * d_out * o_isz)
        return pl.pallas_call(
            _maxdetector_kernel,
            out_shape=jax.ShapeDtypeStruct((B, d_out), out_dtype),
            grid=(pl.cdiv(B, tb),),
            in_specs=[
                pl.BlockSpec((tb, D), lambda i: (i, 0)),            # x batch tile
                pl.BlockSpec((w.shape[0], d_out), lambda i: (0, 0)),  # resident W
                pl.BlockSpec((1, d_out), lambda i: (0, 0)),         # resident bias
            ],
            out_specs=pl.BlockSpec((tb, d_out), lambda i: (i, 0)),
            compiler_params=pltpu.CompilerParams(
                dimension_semantics=("parallel",),
                vmem_limit_bytes=min(budget, max(est + (4 << 20), 16 << 20))),
            interpret=interpret,
        )(x, w, b)

    # ---- K-tiled path (large D): weight streamed, softmax on last K step ----
    tk = params["tk"]
    k_pad = w.shape[0]
    w_slab = 2 * tk * d_out * w.dtype.itemsize + 2 * d_out * 4
    tb = _pick_tile_b(B, tk, d_out, budget - w_slab, n_tc, x_isz, o_isz,
                      extra_row_bytes=d_out * 4)
    est = w_slab + tb * (2 * tk * x_isz + 2 * d_out * o_isz + d_out * 4)
    return pl.pallas_call(
        functools.partial(_maxdetector_kernel_ktiled, d_in=D, tk=tk),
        out_shape=jax.ShapeDtypeStruct((B, d_out), out_dtype),
        grid=(pl.cdiv(B, tb), k_pad // tk),
        in_specs=[
            pl.BlockSpec((tb, tk), lambda i, k: (i, k)),      # x (batch, K) tile
            pl.BlockSpec((tk, d_out), lambda i, k: (k, 0)),   # streamed W slab
            pl.BlockSpec((1, d_out), lambda i, k: (0, 0)),    # resident bias
        ],
        out_specs=pl.BlockSpec((tb, d_out), lambda i, k: (i, 0)),
        scratch_shapes=[pltpu.VMEM((tb, d_out), jnp.float32)],
        compiler_params=pltpu.CompilerParams(
            dimension_semantics=("parallel", "arbitrary"),
            vmem_limit_bytes=min(budget, max(est + (4 << 20), 16 << 20))),
        interpret=interpret,
    )(x, w, b)


def max_detector(x, weight, bias, *, out_dtype=None):
    """One-shot convenience wrapper. For repeated inference call
    prepare_params() once and reuse it with max_detector_forward()."""
    return max_detector_forward(x, prepare_params(weight, bias),
                                out_dtype=out_dtype)


# --------------------------------------------------------------------------
# Demo / self-test
# --------------------------------------------------------------------------
if __name__ == "__main__":
    key = jax.random.PRNGKey(0)
    k_x, k_w, k_b, k_x2, k_w2, k_b2 = jax.random.split(key, 6)

    # --- small demo consistent with the module: batch=16, input_dim=32 ---
    batch, input_dim = 16, 32
    bound = 1.0 / math.sqrt(input_dim)
    weight = jax.random.uniform(k_w, (input_dim, input_dim),
                                jnp.float32, -bound, bound)   # (out, in)
    bias = jax.random.uniform(k_b, (input_dim,), jnp.float32, -bound, bound)
    x = jax.random.normal(k_x, (batch, input_dim), jnp.float32)

    params = prepare_params(weight, bias)          # one-time packing
    out = jax.block_until_ready(max_detector_forward(x, params))

    ref = jax.nn.softmax(x @ weight.T + bias, axis=-1)
    assert out.shape == (batch, input_dim)
    # bf16 MXU operands -> loosened tolerance vs the f32 reference.
    assert jnp.allclose(out, ref, atol=2e-2, rtol=2e-2), "mismatch vs reference"
    assert jnp.allclose(out.sum(axis=-1), 1.0, atol=1e-3), "rows must sum to 1"

    # --- exercise the K-tiled (large-D) path with ragged batch and ragged K ---
    batch2, dim2 = 70, 320
    bound2 = 1.0 / math.sqrt(dim2)
    w2 = jax.random.uniform(k_w2, (dim2, dim2), jnp.float32, -bound2, bound2)
    b2 = jax.random.uniform(k_b2, (dim2,), jnp.float32, -bound2, bound2)
    x2 = jax.random.normal(k_x2, (batch2, dim2), jnp.float32)
    p2 = prepare_params(w2, b2, force_mode="ktiled", tile_k=128)
    out2 = jax.block_until_ready(max_detector_forward(x2, p2))
    ref2 = jax.nn.softmax(x2 @ w2.T + b2, axis=-1)
    assert out2.shape == (batch2, dim2)
    assert jnp.allclose(out2, ref2, atol=2e-2, rtol=2e-2), "ktiled mismatch"

    print("KERNEL_OK")
</pallas_src>

<mosaic_0001>
module attributes {stable_mosaic.version = 11 : i64} {
  func.func @_maxdetector_kernel(%arg0: i32, %arg1: memref<16x32xf32, #tpu.memory_space<vmem>>, %arg2: memref<32x32xbf16, #tpu.memory_space<vmem>>, %arg3: memref<1x32xf32, #tpu.memory_space<vmem>>, %arg4: memref<16x32xf32, #tpu.memory_space<vmem>>) attributes {dimension_semantics = [#tpu.dimension_semantics<parallel>], iteration_bounds = array<i64: 1>, scalar_prefetch = 0 : i64, scratch_operands = 0 : i64, tpu.core_type = #tpu.core_type<tc>, window_params = [{transform_indices = @transform_0, window_bounds = array<i64: 16, 32>}, {pipeline_mode = #tpu.pipeline_mode<synchronous>, transform_indices = @transform_1, window_bounds = array<i64: 32, 32>}, {pipeline_mode = #tpu.pipeline_mode<synchronous>, transform_indices = @transform_2, window_bounds = array<i64: 1, 32>}, {transform_indices = @transform_3, window_bounds = array<i64: 16, 32>}]} {
    %c0 = arith.constant 0 : index
    %c0_0 = arith.constant 0 : index
    %0 = vector.load %arg1[%c0, %c0_0] : memref<16x32xf32, #tpu.memory_space<vmem>>, vector<16x32xf32>
    %1 = arith.truncf %0 : vector<16x32xf32> to vector<16x32xbf16>
    %c0_1 = arith.constant 0 : index
    %c0_2 = arith.constant 0 : index
    %2 = vector.load %arg2[%c0_1, %c0_2] : memref<32x32xbf16, #tpu.memory_space<vmem>>, vector<32x32xbf16>
    %cst = arith.constant dense<0.000000e+00> : vector<16x32xf32>
    %3 = tpu.matmul %1, %2, %cst {dimension_numbers = #tpu.dot_dimension_numbers<[1], [0], [0], [1], [0, 0, 1, 1], [], []>} : vector<16x32xbf16>, vector<32x32xbf16>, vector<16x32xf32> -> vector<16x32xf32>
    %c0_3 = arith.constant 0 : index
    %c0_4 = arith.constant 0 : index
    %4 = vector.load %arg3[%c0_3, %c0_4] : memref<1x32xf32, #tpu.memory_space<vmem>>, vector<1x32xf32>
    %5 = vector.broadcast %4 : vector<1x32xf32> to vector<16x32xf32>
    %6 = arith.addf %3, %5 : vector<16x32xf32>
    %cst_5 = arith.constant dense<0xFF800000> : vector<16xf32>
    %7 = vector.multi_reduction <maximumf>, %6, %cst_5 [1] : vector<16x32xf32> to vector<16xf32>
    %8 = vector.shape_cast %7 : vector<16xf32> to vector<16x1xf32>
    %9 = vector.broadcast %8 : vector<16x1xf32> to vector<16x32xf32>
    %10 = arith.subf %6, %9 : vector<16x32xf32>
    %11 = math.exp %10 : vector<16x32xf32>
    %cst_6 = arith.constant dense<0.000000e+00> : vector<16xf32>
    %12 = vector.multi_reduction <add>, %11, %cst_6 [1] : vector<16x32xf32> to vector<16xf32>
    %13 = vector.shape_cast %12 : vector<16xf32> to vector<16x1xf32>
    %14 = vector.broadcast %13 : vector<16x1xf32> to vector<16x32xf32>
    %15 = arith.divf %11, %14 : vector<16x32xf32>
    %c0_7 = arith.constant 0 : index
    %c0_8 = arith.constant 0 : index
    %16 = vector.load %arg4[%c0_7, %c0_8] : memref<16x32xf32, #tpu.memory_space<vmem>>, vector<16x32xf32>
    tpu.vector_store %arg4[%c0_7, %c0_8], %15 {strides = array<i32>} : memref<16x32xf32, #tpu.memory_space<vmem>>, vector<16x32xf32>,
    return
  }
  func.func @transform_0(%arg0: i32) -> (i32, i32) {
    %c0_i32 = arith.constant 0 : i32
    %c0_i32_0 = arith.constant 0 : i32
    return %arg0, %c0_i32 : i32, i32
  }
  func.func @transform_1(%arg0: i32) -> (i32, i32) {
    %c0_i32 = arith.constant 0 : i32
    %c0_i32_0 = arith.constant 0 : i32
    %c0_i32_1 = arith.constant 0 : i32
    return %c0_i32, %c0_i32_0 : i32, i32
  }
  func.func @transform_2(%arg0: i32) -> (i32, i32) {
    %c0_i32 = arith.constant 0 : i32
    %c0_i32_0 = arith.constant 0 : i32
    %c0_i32_1 = arith.constant 0 : i32
    return %c0_i32, %c0_i32_0 : i32, i32
  }
  func.func @transform_3(%arg0: i32) -> (i32, i32) {
    %c0_i32 = arith.constant 0 : i32
    %c0_i32_0 = arith.constant 0 : i32
    return %arg0, %c0_i32 : i32, i32
  }
}

</mosaic_0001>

<llo_original>
// kernel: tpu_custom_call.1
$region0: #{tpu_custom_call.1}
  #allocation0 [shape = 'u32[]', space=smem, size = 0x4, offset = 0x4, fixed_abs, tag = 'smem constant byte address 0x4 - core index']
  #allocation1 [shape = 'u32[144,128]{1,0:T(1,128)}', space=vmem, size = 0x12000, scoped, tag = 'internal scratch']
  %s0 = inlined_call_operand.hbm [shape: f32[16,32], index: 0, kind: input, shape index: {}]
  %s1 = inlined_call_operand.hbm [shape: bf16[32,32], index: 1, kind: input, shape index: {}]
  %s2 = inlined_call_operand.vmem [shape: f32[1,32], index: 2, kind: input, shape index: {}]
  %s3 = inlined_call_operand.hbm [shape: f32[16,32], index: 3, kind: output, shape index: {}]
  %s4 = sld [smem:[#allocation0]]
  $region30: #{tpu_custom_call.1} parent=0
    _
  %s6 = ssub.s32 1, %s4
  %s7 = scalar_select 0, %s6, %s4
  $region1: #{tpu_custom_call.1} parent=0
    #allocation2 [shape = 'u8[8192]{0}', space=vmem, size = 0x2000, scoped, tag = 'input window, operand 0, single buffered']
    #allocation3 [shape = 's32[1]{0}', space=sflag, size = 0x4, scoped, tag = 'scoped memory for tpu_custom_call.1']
    #allocation4 [shape = 's32[1]{0}', space=sflag, size = 0x4, scoped, tag = 'scoped memory for tpu_custom_call.1']
    #allocation5 [shape = 'u8[8192]{0}', space=vmem, size = 0x2000, scoped, tag = 'input window, operand 1, single buffered']
    #allocation6 [shape = 's32[1]{0}', space=sflag, size = 0x4, scoped, tag = 'scoped memory for tpu_custom_call.1']
    #allocation7 [shape = 'u8[8192]{0}', space=vmem, size = 0x2000, scoped, tag = 'output window, operand 0, single buffered']
    %8 = vsyncpa [#allocation3], 0
    %9 = vsyncpa [#allocation6], 0
    %10 = vsyncpa [#allocation4], 0
    // Predicated region
    $region2: #{tpu_custom_call.1} parent=1 // pred_check
      _
    $region3: #{tpu_custom_call.1} parent=1 // pred_check_branch
      %12 = sbr.rel (0) target = $region5
    $region4: #{tpu_custom_call.1} parent=1 // pred_region
      %s14 = ssub.s32 256, 256
      %15 = vsyncadd [#allocation3], %s14
      %s16 = sshll.u32 [#allocation2], 4
      %s17 = int_to_ptr.vmem [resolvable:$true] %s16
      %22 = dma.hbm_to_vmem [thread:$0]  %s0, 256, %s17, [#allocation3], 128, 128, 8
    $region5: #{tpu_custom_call.1} parent=1 // pred_fallthru
      _
    // Predicated region
    $region6: #{tpu_custom_call.1} parent=1 // pred_check
      _
    $region7: #{tpu_custom_call.1} parent=1 // pred_check_branch
      %24 = sbr.rel (0) target = $region9
    $region8: #{tpu_custom_call.1} parent=1 // pred_region
      %s26 = ssub.s32 256, 256
      %27 = vsyncadd [#allocation6], %s26
      %s28 = sshll.u32 [#allocation5], 4
      %s29 = int_to_ptr.vmem [resolvable:$true] %s28
      %34 = dma.hbm_to_vmem [thread:$0]  %s1, 256, %s29, [#allocation6], 64, 64, 4
    $region9: #{tpu_custom_call.1} parent=1 // pred_fallthru
      _
    // Predicated region
    $region10: #{tpu_custom_call.1} parent=1 // pred_check
      _
    $region11: #{tpu_custom_call.1} parent=1 // pred_check_branch
      %36 = sbr.rel (0) target = $region13
    $region12: #{tpu_custom_call.1} parent=1 // pred_region
      _
    $region13: #{tpu_custom_call.1} parent=1 // pred_fallthru
      _
    // Predicated region
    $region14: #{tpu_custom_call.1} parent=1 // pred_check
      _
    $region15: #{tpu_custom_call.1} parent=1 // pred_check_branch
      %38 = sbr.rel (0) target = $region17
    $region16: #{tpu_custom_call.1} parent=1 // pred_region
      %39 = dma.done [#allocation3], 256
    $region17: #{tpu_custom_call.1} parent=1 // pred_fallthru
      _
    // Predicated region
    $region18: #{tpu_custom_call.1} parent=1 // pred_check
      _
    $region19: #{tpu_custom_call.1} parent=1 // pred_check_branch
      %41 = sbr.rel (0) target = $region21
    $region20: #{tpu_custom_call.1} parent=1 // pred_region
      %42 = dma.done [#allocation6], 256
    $region21: #{tpu_custom_call.1} parent=1 // pred_fallthru
      _
    %v44 = vld [vmem:[#allocation2] sm:$0xff]
    %v45 = vld [vmem:[#allocation2 + $0x8] sm:$0xff]
    %v46 = vpack.c.bf16 %v45, %v44
    %v47 = vld [vmem:[#allocation5] sm:$0xf]
    %v48 = vld [vmem:[#allocation5 + $0x4] sm:$0xf]
    %v49 = vld [vmem:[#allocation5 + $0x8] sm:$0xf]
    %v50 = vld [vmem:[#allocation5 + $0xc] sm:$0xf]
    %v51 = vld [vmem:[%s2] sm:$0x1]
    %v53 = vlaneseq
    %v54 = vshrl.u32 %v53, 7
    %v55 = vsub.s32 0, %v54
    %v56 = vrot.slane %v51, %v55
    %v62 = vunpack.c.l.b16 %v47
    %v63 = vunpack.c.l.b16 %v48
    %v64 = vunpack.c.l.b16 %v49
    %v65 = vunpack.c.l.b16 %v50
    %v66 = vpack.c.b16 %v63, %v62
    %v67 = vpack.c.b16 %v65, %v64
    %vm70 = vcmask 261120
    %v72 = vsel %vm70, %v46, 0
    %74 = vmatprep.subr.bf16.mxu0 0
    %75 = vmatpush1.bf16.msra.mxu0 0
    %76 = vmatprep.subr.bf16.mxu0 0
    %77 = vmatpush1.bf16.msra.mxu0 0
    %78 = vmatprep.subr.bf16.mxu0 0
    %79 = vmatpush1.bf16.msra.mxu0 0
    %80 = vmatprep.subr.bf16.mxu0 0
    %81 = vmatpush1.bf16.msra.mxu0 0
    %82 = vmatprep.subr.bf16.mxu0 0
    %83 = vmatpush1.bf16.msra.mxu0 0
    %84 = vmatprep.subr.bf16.mxu0 0
    %85 = vmatpush1.bf16.msra.mxu0 0
    %86 = vmatprep.subr.bf16.mxu0 0
    %87 = vmatpush1.bf16.msra.mxu0 %v67
    %88 = vmatprep.subr.bf16.mxu0 0
    %89 = vmatpush1.bf16.msra.mxu0 %v66
    %90 = vmatprep.subr.bf16.mxu0 0
    %91 = vmatpush2.bf16.msra.mxu0 0
    %92 = vmatprep.subr.bf16.mxu0 0
    %93 = vmatpush2.bf16.msra.mxu0 0
    %94 = vmatprep.subr.bf16.mxu0 0
    %95 = vmatpush2.bf16.msra.mxu0 0
    %96 = vmatprep.subr.bf16.mxu0 0
    %97 = vmatpush2.bf16.msra.mxu0 0
    %98 = vmatprep.subr.bf16.mxu0 0
    %99 = vmatpush2.bf16.msra.mxu0 0
    %100 = vmatprep.subr.bf16.mxu0 0
    %101 = vmatpush2.bf16.msra.mxu0 0
    %102 = vmatprep.subr.bf16.mxu0 0
    %103 = vmatpush2.bf16.msra.mxu0 0
    %104 = vmatprep.subr.bf16.mxu0 0
    %105 = vmatpush2.bf16.msra.mxu0 0
    %106 = vmatprep.mubr.bf16.mxu0 0
    %107 = vmatmul.mubr.bf16.gmra.mxu0 %v72
    %v108 = vpop.f32.mrf.mxu0
    %v109 = vadd.f32 %v56, %v108
    %v110 = vpop.f32.mrf.mxu0
    %v111 = vpop.f32.mrf.mxu0
    %v112 = vadd.f32 %v56, %v111
    %v113 = vpop.f32.mrf.mxu0
    %114 = vdwg.mxu0
    %v115 = vsel %vm70, %v109, -inf
    %116 = vmax.xlane.f32.xlu0 %v115
    %v117 = vpop.xlane.xlu0 %116
    %v118 = vsel %vm70, %v112, -inf
    %119 = vmax.xlane.f32.xlu0 %v118
    %v120 = vpop.xlane.xlu0 %119
    %v121 = vsub.f32 %v109, %v117
    %v122 = vsub.f32 %v112, %v120
    %v123 = vmul.f32 %v121, 1.442695
    %v124 = vpow.pop %v123
    %v125 = vmul.f32 %v122, 1.442695
    %v126 = vpow.pop %v125
    %v127 = vsel %vm70, %v124, 0.0
    %128 = vadd.xlane.f32.xlu0 %v127
    %v129 = vpop.xlane.xlu0 %128
    %v130 = vsel %vm70, %v126, 0.0
    %131 = vadd.xlane.f32.xlu0 %v130
    %v132 = vpop.xlane.xlu0 %131
    %v133 = vrcp.pop %v129
    %v134 = vmul.f32 %v124, %v133
    %v135 = vrcp.pop %v132
    %v136 = vmul.f32 %v126, %v135
    %137 = vst.msk [vmem:[#allocation7] sm:$0xff] %vm70, %v134
    %138 = vst.msk [vmem:[#allocation7 + $0x8] sm:$0xff] %vm70, %v136
    // Predicated region
    $region22: #{tpu_custom_call.1} parent=1 // pred_check
      _
    $region23: #{tpu_custom_call.1} parent=1 // pred_check_branch
      %140 = sbr.rel (0) target = $region25
    $region24: #{tpu_custom_call.1} parent=1 // pred_region
      %s142 = ssub.s32 256, 256
      %143 = vsyncadd [#allocation4], %s142
      %s144 = sshll.u32 [#allocation7], 4
      %s145 = int_to_ptr.vmem [resolvable:$true] %s144
      %150 = dma.vmem_to_hbm [thread:$0]  %s145, 256, %s3, [#allocation4], 128, 128, 8
    $region25: #{tpu_custom_call.1} parent=1 // pred_fallthru
      _
    // Predicated region
    $region26: #{tpu_custom_call.1} parent=1 // pred_check
      _
    $region27: #{tpu_custom_call.1} parent=1 // pred_check_branch
      %152 = sbr.rel (0) target = $region29
    $region28: #{tpu_custom_call.1} parent=1 // pred_region
      %153 = dma.done [#allocation4], 256
    $region29: #{tpu_custom_call.1} parent=1 // pred_fallthru
      _
    %154 = vsyncpa [#allocation3], 1
    %155 = vsyncpa [#allocation6], 1
    %156 = vsyncpa [#allocation4], 1

</llo_original>
